<compile_context>
chip_gen: v7x
topology: tpu7x:2x2x1
jax: 0.10.0
libtpu: 0.0.40
codegen_flags: <defaults>
</compile_context>

<pallas_src>
import jax
import jax.numpy as jnp
from jax.experimental import pallas as pl
from jax.experimental.pallas import tpu as pltpu

_LANE = 128
_SUBLANE = 8


def _round_up(n, m):
    return ((n + m - 1) // m) * m


def _largest_tile(dim, cap=512):
    """Largest multiple-of-128 tile <= cap dividing `dim` (dim is 128-aligned)."""
    t = cap
    while t > _LANE:
        if dim % t == 0:
            return t
        t //= 2
    return min(_LANE, dim)


def _device_info():
    """Best-effort (physical VMEM bytes per core, suggested batch tile)."""
    kind = ""
    try:
        kind = jax.devices()[0].device_kind.lower()
    except Exception:
        pass
    vmem = None
    try:
        vmem = int(pltpu.get_tpu_info().vmem_capacity_bytes)
    except Exception:
        pass
    if "v6" in kind:
        return (vmem or 128 * 2**20), 512        # v6e: 128 MiB VMEM, bigger tiles pay off
    if "v5" in kind:
        return (vmem or 128 * 2**20), 256        # v5e: 128 MiB VMEM, 4x128 MXU -> 128-256 tiles
    if "v7" in kind or "7x" in kind:
        return (vmem or 64 * 2**20), 256         # v7x: 64 MiB per TC -> cap tiles
    return (vmem or 64 * 2**20), 256             # unknown: conservative (v7x-like)


# ---------------------------------------------------------------------------
# One-time parameter preparation (hoisted out of the per-call path).
# PyTorch weights are (out, in); we store (in_pad, out_pad) so the kernel does
# plain x @ W on the MXU (no in-kernel transpose).  Zero padding is exact:
# padded input cols hit zero weight rows, padded output cols get zero weight +
# zero bias and SiLU(0) == 0.
# ---------------------------------------------------------------------------
def prepare_mlp_params(params, *, compute_dtype=jnp.bfloat16):
    dims = [params[0][0].shape[1]] + [w.shape[0] for (w, _) in params]
    pdims = [_round_up(d, _LANE) for d in dims]
    weights = []
    for l, (w, b) in enumerate(params):
        d_in, d_out = pdims[l], pdims[l + 1]
        wt = (jnp.zeros((d_in, d_out), compute_dtype)
              .at[: w.shape[1], : w.shape[0]].set(jnp.asarray(w).T.astype(compute_dtype)))
        bp = (jnp.zeros((1, d_out), jnp.float32)
              .at[:, : b.shape[0]].set(jnp.asarray(b).astype(jnp.float32)))
        weights.append((wt, bp))
    return {"weights": weights, "dims": dims, "pdims": pdims,
            "compute_dtype": compute_dtype}


def _silu(h, approx):
    if approx:
        # exp and approximate reciprocal both go to the EUP slot (VALU-free).
        return h * pl.reciprocal(1.0 + jnp.exp(-h), approx=True)
    return h * jax.nn.sigmoid(h)


# ---------------------------------------------------------------------------
# Fused whole-MLP kernel: all layers in one grid step, activations stay in
# VMEM/vregs.  refs = (x_ref, w0, b0, w1, b1, ..., o_ref).
# ---------------------------------------------------------------------------
def _make_fused_kernel(num_layers, compute_dtype):
    approx = compute_dtype != jnp.float32

    def kernel(*refs):
        x_ref, o_ref, wb = refs[0], refs[-1], refs[1:-1]
        h = x_ref[...]
        acc = None
        for l in range(num_layers):
            w = wb[2 * l][...]                              # (din_pad, dout_pad)
            b = wb[2 * l + 1][...]                          # (1, dout_pad), f32
            acc = jnp.dot(h, w, preferred_element_type=jnp.float32) + b
            if l != num_layers - 1:
                acc = _silu(acc, approx)                    # f32 epilogue
                h = acc.astype(compute_dtype)
        o_ref[...] = acc.astype(o_ref.dtype)

    return kernel


def _run_fused(xp, prepared, *, tm, out_dtype, vmem_limit, single_buffer_weights):
    weights = prepared["weights"]
    pdims = prepared["pdims"]
    compute_dtype = prepared["compute_dtype"]
    num_layers = len(weights)
    b_pad = xp.shape[0]

    resident_kw = {"pipeline_mode": pl.Buffered(1)} if single_buffer_weights else {}

    in_specs = [pl.BlockSpec((tm, pdims[0]), lambda i: (i, 0))]
    flat_inputs = [xp]
    for (wt, bp) in weights:
        d_in, d_out = wt.shape
        # Constant index_map -> resident across batch tiles; Buffered(1) avoids
        # pointless double-buffering of data that never changes.
        in_specs.append(pl.BlockSpec((d_in, d_out), lambda i: (0, 0), **resident_kw))
        in_specs.append(pl.BlockSpec((1, d_out), lambda i: (0, 0), **resident_kw))
        flat_inputs += [wt, bp]
    out_specs = pl.BlockSpec((tm, pdims[-1]), lambda i: (i, 0))

    csize = jnp.dtype(compute_dtype).itemsize
    osize = jnp.dtype(out_dtype).itemsize
    flops = 2 * b_pad * sum(pdims[l] * pdims[l + 1] for l in range(num_layers))
    transcendentals = 2 * b_pad * sum(pdims[l + 1] for l in range(num_layers - 1))
    bytes_accessed = (b_pad * pdims[0] * csize + b_pad * pdims[-1] * osize
                      + sum(int(wt.size) * wt.dtype.itemsize + int(bp.size) * 4
                            for (wt, bp) in weights))

    return pl.pallas_call(
        _make_fused_kernel(num_layers, compute_dtype),
        out_shape=jax.ShapeDtypeStruct((b_pad, pdims[-1]), out_dtype),
        grid_spec=pltpu.PrefetchScalarGridSpec(
            num_scalar_prefetch=0,
            grid=(b_pad // tm,),
            in_specs=in_specs,
            out_specs=out_specs,
        ),
        compiler_params=pltpu.CompilerParams(
            dimension_semantics=("parallel",),       # batch tiles split across TCs
            vmem_limit_bytes=int(vmem_limit),
        ),
        cost_estimate=pl.CostEstimate(
            flops=int(flops),
            transcendentals=int(transcendentals),
            bytes_accessed=int(bytes_accessed),
        ),
    )(*flat_inputs)


# ---------------------------------------------------------------------------
# Fallback: per-layer K/N-tiled matmul (+bias, +SiLU) for layers whose
# weight-resident footprint would blow the per-core VMEM budget (e.g. v7x).
# ---------------------------------------------------------------------------
def _fc_tiled_kernel(apply_silu, approx):
    def kernel(x_ref, w_ref, b_ref, o_ref, acc_ref):
        k = pl.program_id(2)

        @pl.when(k == 0)
        def _init():
            acc_ref[...] = jnp.zeros_like(acc_ref)

        acc_ref[...] += jnp.dot(x_ref[...], w_ref[...],
                                preferred_element_type=jnp.float32)

        @pl.when(k == pl.num_programs(2) - 1)
        def _finalize():
            h = acc_ref[...] + b_ref[...]
            if apply_silu:
                h = _silu(h, approx)
            o_ref[...] = h.astype(o_ref.dtype)

    return kernel


def _fc_layer_tiled(xp, wt, bp, *, apply_silu, approx, out_dtype, tm, vmem_limit):
    M, K = xp.shape
    _, N = wt.shape
    tk = _largest_tile(K)
    tn = _largest_tile(N)
    grid = (M // tm, N // tn, K // tk)
    return pl.pallas_call(
        _fc_tiled_kernel(apply_silu, approx),
        out_shape=jax.ShapeDtypeStruct((M, N), out_dtype),
        grid_spec=pltpu.PrefetchScalarGridSpec(
            num_scalar_prefetch=0,
            grid=grid,
            in_specs=[pl.BlockSpec((tm, tk), lambda i, j, k: (i, k)),
                      pl.BlockSpec((tk, tn), lambda i, j, k: (k, j)),
                      pl.BlockSpec((1, tn), lambda i, j, k: (0, j))],
            out_specs=pl.BlockSpec((tm, tn), lambda i, j, k: (i, j)),
            scratch_shapes=[pltpu.VMEM((tm, tn), jnp.float32)],
        ),
        compiler_params=pltpu.CompilerParams(
            dimension_semantics=("parallel", "parallel", "arbitrary"),
            vmem_limit_bytes=int(vmem_limit),
        ),
    )(xp, wt, bp)


# ---------------------------------------------------------------------------
# Wrapper: tile selection, padding (skipped when aligned), fused vs tiled path.
# ---------------------------------------------------------------------------
def mlp_forward(x, prepared, *, tile_m=None, out_dtype=None, force_tiled=False):
    weights = prepared["weights"]
    dims = prepared["dims"]
    pdims = prepared["pdims"]
    compute_dtype = prepared["compute_dtype"]

    batch, in_dim = x.shape
    assert in_dim == dims[0], "input feature dim mismatch with prepared params"
    out_dim = dims[-1]
    out_dtype = out_dtype if out_dtype is not None else compute_dtype

    vmem_phys, default_tm = _device_info()
    vmem_limit = min(int(vmem_phys * 0.82), 127 * 2**20)

    # --- batch tile selection (per generation, capped by batch) -------------
    tm = int(tile_m) if tile_m is not None else default_tm
    if batch < tm:
        tm = max(_SUBLANE, _round_up(batch, _SUBLANE))
    # Small-batch megacore: with a single grid step one v7x TensorCore idles.
    if _round_up(batch, tm) // tm < 2 and tm >= 256:
        tm //= 2
    b_pad = _round_up(batch, tm)

    # --- VMEM budget check for the weight-resident fused path ---------------
    csize = jnp.dtype(compute_dtype).itemsize
    osize = jnp.dtype(out_dtype).itemsize
    w_bytes = sum(int(wt.size) * wt.dtype.itemsize + int(bp.size) * 4
                  for (wt, bp) in weights)

    def fused_need(tm_):
        io = 2 * tm_ * pdims[0] * csize + 2 * tm_ * pdims[-1] * osize   # dbl-buffered x/out
        act = 2 * tm_ * max(pdims) * 4                                  # f32 acc + next input
        return w_bytes + io + act

    budget = int(vmem_limit * 0.75)
    while fused_need(tm) > budget and tm > _LANE:
        tm = max(_SUBLANE, _round_up(tm // 2, _SUBLANE))
        b_pad = _round_up(batch, tm)
    use_fused = (not force_tiled) and fused_need(tm) <= budget

    # --- input pad / cast (skip the copy when already aligned) --------------
    if b_pad != batch or pdims[0] != in_dim:
        xp = (jnp.zeros((b_pad, pdims[0]), compute_dtype)
              .at[:batch, :in_dim].set(x.astype(compute_dtype)))
    else:
        xp = x if x.dtype == compute_dtype else x.astype(compute_dtype)

    if use_fused:
        try:
            out = _run_fused(xp, prepared, tm=tm, out_dtype=out_dtype,
                             vmem_limit=vmem_limit, single_buffer_weights=True)
        except Exception:
            # pl.Buffered(1) not supported by this jax build -> default buffering.
            out = _run_fused(xp, prepared, tm=tm, out_dtype=out_dtype,
                             vmem_limit=vmem_limit, single_buffer_weights=False)
    else:
        # Weight-resident design does not fit the per-core VMEM budget
        # (e.g. very wide layers on v7x's 64 MiB): per-layer K/N-tiled matmuls.
        approx = compute_dtype != jnp.float32
        h = xp
        n = len(weights)
        for l, (wt, bp) in enumerate(weights):
            last = (l == n - 1)
            h = _fc_layer_tiled(h, wt, bp,
                                apply_silu=not last,
                                approx=approx,
                                out_dtype=out_dtype if last else compute_dtype,
                                tm=tm, vmem_limit=vmem_limit)
        out = h

    return out[:batch, :out_dim]


# ---------------------------------------------------------------------------
# Parameter init (matches FCLayer.reset_parameters):
#   weight: xavier_uniform_(W, gain=1/in_dim) -> U(-a, a),
#           a = gain * sqrt(6 / (fan_in + fan_out)); bias: zeros.
# ---------------------------------------------------------------------------
def init_mlp_params(key, in_dim, out_dim, layers, hidden_size):
    dims = []
    if layers <= 1:
        dims.append((in_dim, out_dim))
    else:
        dims.append((in_dim, hidden_size))
        for _ in range(layers - 2):
            dims.append((hidden_size, hidden_size))
        dims.append((hidden_size, out_dim))

    params = []
    for (d_in, d_out) in dims:
        key, sub = jax.random.split(key)
        gain = 1.0 / d_in
        bound = gain * (6.0 / (d_in + d_out)) ** 0.5
        w = jax.random.uniform(sub, (d_out, d_in), minval=-bound, maxval=bound,
                               dtype=jnp.float32)
        b = jnp.zeros((d_out,), dtype=jnp.float32)
        params.append((w, b))
    return params


# ---------------------------------------------------------------------------
# Plain-JAX reference for correctness check
# ---------------------------------------------------------------------------
def mlp_reference(x, params):
    n = len(params)
    for i, (w, b) in enumerate(params):
        h = x @ w.T + b
        if i != n - 1:
            h = h * jax.nn.sigmoid(h)
        x = h
    return x


if __name__ == "__main__":
    # Small shapes consistent with the module: batch=8, in_dim=32,
    # hidden_size=32, out_dim=16, layers=3.
    batch, in_dim, hidden, out_dim, layers = 8, 32, 32, 16, 3

    key = jax.random.PRNGKey(0)
    key, kx = jax.random.split(key)
    x = jax.random.normal(kx, (batch, in_dim), dtype=jnp.float32)
    params = init_mlp_params(key, in_dim, out_dim, layers, hidden)

    ref = mlp_reference(x, params)

    # f32 path (exact vs reference): fused, weight-resident kernel.
    prep_f32 = prepare_mlp_params(params, compute_dtype=jnp.float32)
    out = jax.block_until_ready(mlp_forward(x, prep_f32, out_dtype=jnp.float32))
    assert out.shape == (batch, out_dim)
    assert jnp.allclose(out, ref, atol=1e-5, rtol=1e-4), "f32 mismatch vs reference"

    # bf16 default path (v6e/v7x fast path): bf16 weights/activations + output,
    # f32 MXU accumulation, f32 bias + EUP-approx SiLU epilogue.
    prep_bf16 = prepare_mlp_params(params)           # compute_dtype=bf16 by default
    out_bf16 = jax.block_until_ready(mlp_forward(x, prep_bf16))
    assert out_bf16.shape == (batch, out_dim)
    assert jnp.allclose(out_bf16.astype(jnp.float32), ref, atol=1e-2, rtol=1e-1), \
        "bf16 mismatch vs reference"

    # Exercise the VMEM-overflow fallback (per-layer K/N-tiled kernels) at small
    # scale so that path stays compiled & correct.
    out_tiled = jax.block_until_ready(
        mlp_forward(x, prep_f32, out_dtype=jnp.float32, force_tiled=True))
    assert out_tiled.shape == (batch, out_dim)
    assert jnp.allclose(out_tiled, ref, atol=1e-5, rtol=1e-4), \
        "tiled-fallback mismatch vs reference"

    print("KERNEL_OK")
</pallas_src>

<mosaic_0001>
module attributes {stable_mosaic.version = 11 : i64} {
  func.func @kernel(%arg0: i32, %arg1: memref<8x128xf32, #tpu.memory_space<vmem>>, %arg2: memref<128x128xf32, #tpu.memory_space<vmem>>, %arg3: memref<1x128xf32, #tpu.memory_space<vmem>>, %arg4: memref<128x128xf32, #tpu.memory_space<vmem>>, %arg5: memref<1x128xf32, #tpu.memory_space<vmem>>, %arg6: memref<128x128xf32, #tpu.memory_space<vmem>>, %arg7: memref<1x128xf32, #tpu.memory_space<vmem>>, %arg8: memref<8x128xf32, #tpu.memory_space<vmem>>) attributes {dimension_semantics = [#tpu.dimension_semantics<parallel>], iteration_bounds = array<i64: 1>, scalar_prefetch = 0 : i64, scratch_operands = 0 : i64, tpu.core_type = #tpu.core_type<tc>, window_params = [{transform_indices = @transform_0, window_bounds = array<i64: 8, 128>}, {pipeline_mode = #tpu.pipeline_mode<synchronous>, transform_indices = @transform_1, window_bounds = array<i64: 128, 128>}, {pipeline_mode = #tpu.pipeline_mode<synchronous>, transform_indices = @transform_2, window_bounds = array<i64: 1, 128>}, {pipeline_mode = #tpu.pipeline_mode<synchronous>, transform_indices = @transform_3, window_bounds = array<i64: 128, 128>}, {pipeline_mode = #tpu.pipeline_mode<synchronous>, transform_indices = @transform_4, window_bounds = array<i64: 1, 128>}, {pipeline_mode = #tpu.pipeline_mode<synchronous>, transform_indices = @transform_5, window_bounds = array<i64: 128, 128>}, {pipeline_mode = #tpu.pipeline_mode<synchronous>, transform_indices = @transform_6, window_bounds = array<i64: 1, 128>}, {transform_indices = @transform_7, window_bounds = array<i64: 8, 128>}]} {
    %c0 = arith.constant 0 : index
    %c0_0 = arith.constant 0 : index
    %0 = vector.load %arg1[%c0, %c0_0] : memref<8x128xf32, #tpu.memory_space<vmem>>, vector<8x128xf32>
    %c0_1 = arith.constant 0 : index
    %c0_2 = arith.constant 0 : index
    %1 = vector.load %arg2[%c0_1, %c0_2] : memref<128x128xf32, #tpu.memory_space<vmem>>, vector<128x128xf32>
    %c0_3 = arith.constant 0 : index
    %c0_4 = arith.constant 0 : index
    %2 = vector.load %arg3[%c0_3, %c0_4] : memref<1x128xf32, #tpu.memory_space<vmem>>, vector<1x128xf32>
    %cst = arith.constant dense<0.000000e+00> : vector<8x128xf32>
    %3 = tpu.matmul %0, %1, %cst {dimension_numbers = #tpu.dot_dimension_numbers<[1], [0], [0], [1], [0, 0, 1, 1], [], []>} : vector<8x128xf32>, vector<128x128xf32>, vector<8x128xf32> -> vector<8x128xf32>
    %4 = vector.broadcast %2 : vector<1x128xf32> to vector<8x128xf32>
    %5 = arith.addf %3, %4 : vector<8x128xf32>
    %6 = arith.negf %5 : vector<8x128xf32>
    %7 = math.exp %6 : vector<8x128xf32>
    %cst_5 = arith.constant 1.000000e+00 : f32
    %8 = vector.broadcast %cst_5 : f32 to vector<8x128xf32>
    %9 = arith.addf %8, %7 : vector<8x128xf32>
    %10 = arith.divf %8, %9 : vector<8x128xf32>
    %11 = arith.mulf %5, %10 : vector<8x128xf32>
    %c0_6 = arith.constant 0 : index
    %c0_7 = arith.constant 0 : index
    %12 = vector.load %arg4[%c0_6, %c0_7] : memref<128x128xf32, #tpu.memory_space<vmem>>, vector<128x128xf32>
    %c0_8 = arith.constant 0 : index
    %c0_9 = arith.constant 0 : index
    %13 = vector.load %arg5[%c0_8, %c0_9] : memref<1x128xf32, #tpu.memory_space<vmem>>, vector<1x128xf32>
    %cst_10 = arith.constant dense<0.000000e+00> : vector<8x128xf32>
    %14 = tpu.matmul %11, %12, %cst_10 {dimension_numbers = #tpu.dot_dimension_numbers<[1], [0], [0], [1], [0, 0, 1, 1], [], []>} : vector<8x128xf32>, vector<128x128xf32>, vector<8x128xf32> -> vector<8x128xf32>
    %15 = vector.broadcast %13 : vector<1x128xf32> to vector<8x128xf32>
    %16 = arith.addf %14, %15 : vector<8x128xf32>
    %17 = arith.negf %16 : vector<8x128xf32>
    %18 = math.exp %17 : vector<8x128xf32>
    %cst_11 = arith.constant 1.000000e+00 : f32
    %19 = vector.broadcast %cst_11 : f32 to vector<8x128xf32>
    %20 = arith.addf %19, %18 : vector<8x128xf32>
    %21 = arith.divf %19, %20 : vector<8x128xf32>
    %22 = arith.mulf %16, %21 : vector<8x128xf32>
    %c0_12 = arith.constant 0 : index
    %c0_13 = arith.constant 0 : index
    %23 = vector.load %arg6[%c0_12, %c0_13] : memref<128x128xf32, #tpu.memory_space<vmem>>, vector<128x128xf32>
    %c0_14 = arith.constant 0 : index
    %c0_15 = arith.constant 0 : index
    %24 = vector.load %arg7[%c0_14, %c0_15] : memref<1x128xf32, #tpu.memory_space<vmem>>, vector<1x128xf32>
    %cst_16 = arith.constant dense<0.000000e+00> : vector<8x128xf32>
    %25 = tpu.matmul %22, %23, %cst_16 {dimension_numbers = #tpu.dot_dimension_numbers<[1], [0], [0], [1], [0, 0, 1, 1], [], []>} : vector<8x128xf32>, vector<128x128xf32>, vector<8x128xf32> -> vector<8x128xf32>
    %26 = vector.broadcast %24 : vector<1x128xf32> to vector<8x128xf32>
    %27 = arith.addf %25, %26 : vector<8x128xf32>
    %c0_17 = arith.constant 0 : index
    %c0_18 = arith.constant 0 : index
    %28 = vector.load %arg8[%c0_17, %c0_18] : memref<8x128xf32, #tpu.memory_space<vmem>>, vector<8x128xf32>
    tpu.vector_store %arg8[%c0_17, %c0_18], %27 {strides = array<i32>} : memref<8x128xf32, #tpu.memory_space<vmem>>, vector<8x128xf32>,
    return
  }
  func.func @transform_0(%arg0: i32) -> (i32, i32) {
    %c0_i32 = arith.constant 0 : i32
    %c0_i32_0 = arith.constant 0 : i32
    return %arg0, %c0_i32 : i32, i32
  }
  func.func @transform_1(%arg0: i32) -> (i32, i32) {
    %c0_i32 = arith.constant 0 : i32
    %c0_i32_0 = arith.constant 0 : i32
    %c0_i32_1 = arith.constant 0 : i32
    return %c0_i32, %c0_i32_0 : i32, i32
  }
  func.func @transform_2(%arg0: i32) -> (i32, i32) {
    %c0_i32 = arith.constant 0 : i32
    %c0_i32_0 = arith.constant 0 : i32
    %c0_i32_1 = arith.constant 0 : i32
    return %c0_i32, %c0_i32_0 : i32, i32
  }
  func.func @transform_3(%arg0: i32) -> (i32, i32) {
    %c0_i32 = arith.constant 0 : i32
    %c0_i32_0 = arith.constant 0 : i32
    %c0_i32_1 = arith.constant 0 : i32
    return %c0_i32, %c0_i32_0 : i32, i32
  }
  func.func @transform_4(%arg0: i32) -> (i32, i32) {
    %c0_i32 = arith.constant 0 : i32
    %c0_i32_0 = arith.constant 0 : i32
    %c0_i32_1 = arith.constant 0 : i32
    return %c0_i32, %c0_i32_0 : i32, i32
  }
  func.func @transform_5(%arg0: i32) -> (i32, i32) {
    %c0_i32 = arith.constant 0 : i32
    %c0_i32_0 = arith.constant 0 : i32
    %c0_i32_1 = arith.constant 0 : i32
    return %c0_i32, %c0_i32_0 : i32, i32
  }
  func.func @transform_6(%arg0: i32) -> (i32, i32) {
    %c0_i32 = arith.constant 0 : i32
    %c0_i32_0 = arith.constant 0 : i32
    %c0_i32_1 = arith.constant 0 : i32
    return %c0_i32, %c0_i32_0 : i32, i32
  }
  func.func @transform_7(%arg0: i32) -> (i32, i32) {
    %c0_i32 = arith.constant 0 : i32
    %c0_i32_0 = arith.constant 0 : i32
    return %arg0, %c0_i32 : i32, i32
  }
}

module attributes {stable_mosaic.version = 11 : i64} {
  func.func @kernel(%arg0: i32, %arg1: memref<8x128xf32, #tpu.memory_space<vmem>>, %arg2: memref<128x128xf32, #tpu.memory_space<vmem>>, %arg3: memref<1x128xf32, #tpu.memory_space<vmem>>, %arg4: memref<128x128xf32, #tpu.memory_space<vmem>>, %arg5: memref<1x128xf32, #tpu.memory_space<vmem>>, %arg6: memref<128x128xf32, #tpu.memory_space<vmem>>, %arg7: memref<1x128xf32, #tpu.memory_space<vmem>>, %arg8: memref<8x128xf32, #tpu.memory_space<vmem>>) attributes {dimension_semantics = [#tpu.dimension_semantics<parallel>], iteration_bounds = array<i64: 1>, scalar_prefetch = 0 : i64, scratch_operands = 0 : i64, tpu.core_type = #tpu.core_type<tc>, window_params = [{transform_indices = @transform_0, window_bounds = array<i64: 8, 128>}, {pipeline_mode = #tpu.pipeline_mode<synchronous>, transform_indices = @transform_1, window_bounds = array<i64: 128, 128>}, {pipeline_mode = #tpu.pipeline_mode<synchronous>, transform_indices = @transform_2, window_bounds = array<i64: 1, 128>}, {pipeline_mode = #tpu.pipeline_mode<synchronous>, transform_indices = @transform_3, window_bounds = array<i64: 128, 128>}, {pipeline_mode = #tpu.pipeline_mode<synchronous>, transform_indices = @transform_4, window_bounds = array<i64: 1, 128>}, {pipeline_mode = #tpu.pipeline_mode<synchronous>, transform_indices = @transform_5, window_bounds = array<i64: 128, 128>}, {pipeline_mode = #tpu.pipeline_mode<synchronous>, transform_indices = @transform_6, window_bounds = array<i64: 1, 128>}, {transform_indices = @transform_7, window_bounds = array<i64: 8, 128>}]} {
    %c0 = arith.constant 0 : index
    %c0_0 = arith.constant 0 : index
    %0 = vector.load %arg1[%c0, %c0_0] : memref<8x128xf32, #tpu.memory_space<vmem>>, vector<8x128xf32>
    %c0_1 = arith.constant 0 : index
    %c0_2 = arith.constant 0 : index
    %1 = vector.load %arg2[%c0_1, %c0_2] : memref<128x128xf32, #tpu.memory_space<vmem>>, vector<128x128xf32>
    %c0_3 = arith.constant 0 : index
    %c0_4 = arith.constant 0 : index
    %2 = vector.load %arg3[%c0_3, %c0_4] : memref<1x128xf32, #tpu.memory_space<vmem>>, vector<1x128xf32>
    %cst = arith.constant dense<0.000000e+00> : vector<8x128xf32>
    %3 = tpu.matmul %0, %1, %cst {dimension_numbers = #tpu.dot_dimension_numbers<[1], [0], [0], [1], [0, 0, 1, 1], [], []>} : vector<8x128xf32>, vector<128x128xf32>, vector<8x128xf32> -> vector<8x128xf32>
    %4 = vector.broadcast %2 : vector<1x128xf32> to vector<8x128xf32>
    %5 = arith.addf %3, %4 : vector<8x128xf32>
    %6 = arith.negf %5 : vector<8x128xf32>
    %7 = math.exp %6 : vector<8x128xf32>
    %cst_5 = arith.constant 1.000000e+00 : f32
    %8 = vector.broadcast %cst_5 : f32 to vector<8x128xf32>
    %9 = arith.addf %8, %7 : vector<8x128xf32>
    %10 = arith.divf %8, %9 : vector<8x128xf32>
    %11 = arith.mulf %5, %10 : vector<8x128xf32>
    %c0_6 = arith.constant 0 : index
    %c0_7 = arith.constant 0 : index
    %12 = vector.load %arg4[%c0_6, %c0_7] : memref<128x128xf32, #tpu.memory_space<vmem>>, vector<128x128xf32>
    %c0_8 = arith.constant 0 : index
    %c0_9 = arith.constant 0 : index
    %13 = vector.load %arg5[%c0_8, %c0_9] : memref<1x128xf32, #tpu.memory_space<vmem>>, vector<1x128xf32>
    %cst_10 = arith.constant dense<0.000000e+00> : vector<8x128xf32>
    %14 = tpu.matmul %11, %12, %cst_10 {dimension_numbers = #tpu.dot_dimension_numbers<[1], [0], [0], [1], [0, 0, 1, 1], [], []>} : vector<8x128xf32>, vector<128x128xf32>, vector<8x128xf32> -> vector<8x128xf32>
    %15 = vector.broadcast %13 : vector<1x128xf32> to vector<8x128xf32>
    %16 = arith.addf %14, %15 : vector<8x128xf32>
    %17 = arith.negf %16 : vector<8x128xf32>
    %18 = math.exp %17 : vector<8x128xf32>
    %cst_11 = arith.constant 1.000000e+00 : f32
    %19 = vector.broadcast %cst_11 : f32 to vector<8x128xf32>
    %20 = arith.addf %19, %18 : vector<8x128xf32>
    %21 = arith.divf %19, %20 : vector<8x128xf32>
    %22 = arith.mulf %16, %21 : vector<8x128xf32>
    %c0_12 = arith.constant 0 : index
    %c0_13 = arith.constant 0 : index
    %23 = vector.load %arg6[%c0_12, %c0_13] : memref<128x128xf32, #tpu.memory_space<vmem>>, vector<128x128xf32>
    %c0_14 = arith.constant 0 : index
    %c0_15 = arith.constant 0 : index
    %24 = vector.load %arg7[%c0_14, %c0_15] : memref<1x128xf32, #tpu.memory_space<vmem>>, vector<1x128xf32>
    %cst_16 = arith.constant dense<0.000000e+00> : vector<8x128xf32>
    %25 = tpu.matmul %22, %23, %cst_16 {dimension_numbers = #tpu.dot_dimension_numbers<[1], [0], [0], [1], [0, 0, 1, 1], [], []>} : vector<8x128xf32>, vector<128x128xf32>, vector<8x128xf32> -> vector<8x128xf32>
    %26 = vector.broadcast %24 : vector<1x128xf32> to vector<8x128xf32>
    %27 = arith.addf %25, %26 : vector<8x128xf32>
    %c0_17 = arith.constant 0 : index
    %c0_18 = arith.constant 0 : index
    %28 = vector.load %arg8[%c0_17, %c0_18] : memref<8x128xf32, #tpu.memory_space<vmem>>, vector<8x128xf32>
    tpu.vector_store %arg8[%c0_17, %c0_18], %27 {strides = array<i32>} : memref<8x128xf32, #tpu.memory_space<vmem>>, vector<8x128xf32>,
    return
  }
  func.func @transform_0(%arg0: i32) -> (i32, i32) {
    %c0_i32 = arith.constant 0 : i32
    %c0_i32_0 = arith.constant 0 : i32
    return %arg0, %c0_i32 : i32, i32
  }
  func.func @transform_1(%arg0: i32) -> (i32, i32) {
    %c0_i32 = arith.constant 0 : i32
    %c0_i32_0 = arith.constant 0 : i32
    %c0_i32_1 = arith.constant 0 : i32
    return %c0_i32, %c0_i32_0 : i32, i32
  }
  func.func @transform_2(%arg0: i32) -> (i32, i32) {
    %c0_i32 = arith.constant 0 : i32
    %c0_i32_0 = arith.constant 0 : i32
    %c0_i32_1 = arith.constant 0 : i32
    return %c0_i32, %c0_i32_0 : i32, i32
  }
  func.func @transform_3(%arg0: i32) -> (i32, i32) {
    %c0_i32 = arith.constant 0 : i32
    %c0_i32_0 = arith.constant 0 : i32
    %c0_i32_1 = arith.constant 0 : i32
    return %c0_i32, %c0_i32_0 : i32, i32
  }
  func.func @transform_4(%arg0: i32) -> (i32, i32) {
    %c0_i32 = arith.constant 0 : i32
    %c0_i32_0 = arith.constant 0 : i32
    %c0_i32_1 = arith.constant 0 : i32
    return %c0_i32, %c0_i32_0 : i32, i32
  }
  func.func @transform_5(%arg0: i32) -> (i32, i32) {
    %c0_i32 = arith.constant 0 : i32
    %c0_i32_0 = arith.constant 0 : i32
    %c0_i32_1 = arith.constant 0 : i32
    return %c0_i32, %c0_i32_0 : i32, i32
  }
  func.func @transform_6(%arg0: i32) -> (i32, i32) {
    %c0_i32 = arith.constant 0 : i32
    %c0_i32_0 = arith.constant 0 : i32
    %c0_i32_1 = arith.constant 0 : i32
    return %c0_i32, %c0_i32_0 : i32, i32
  }
  func.func @transform_7(%arg0: i32) -> (i32, i32) {
    %c0_i32 = arith.constant 0 : i32
    %c0_i32_0 = arith.constant 0 : i32
    return %arg0, %c0_i32 : i32, i32
  }
}

</mosaic_0001>

<llo_original>
// kernel: tpu_custom_call.1
$region0: #{tpu_custom_call.1}
  #allocation0 [shape = 'u32[]', space=smem, size = 0x4, offset = 0x4, fixed_abs, tag = 'smem constant byte address 0x4 - core index']
  #allocation1 [shape = 'u32[144,128]{1,0:T(1,128)}', space=vmem, size = 0x12000, scoped, tag = 'internal scratch']
  %s0 = inlined_call_operand.hbm [shape: f32[8,128], index: 0, kind: input, shape index: {}]
  %s1 = inlined_call_operand.hbm [shape: f32[128,128], index: 1, kind: input, shape index: {}]
  %s2 = inlined_call_operand.vmem [shape: f32[1,128], index: 2, kind: input, shape index: {}]
  %s3 = inlined_call_operand.hbm [shape: f32[128,128], index: 3, kind: input, shape index: {}]
  %s4 = inlined_call_operand.vmem [shape: f32[1,128], index: 4, kind: input, shape index: {}]
  %s5 = inlined_call_operand.hbm [shape: f32[128,128], index: 5, kind: input, shape index: {}]
  %s6 = inlined_call_operand.vmem [shape: f32[1,128], index: 6, kind: input, shape index: {}]
  %s7 = inlined_call_operand.hbm [shape: f32[8,128], index: 7, kind: output, shape index: {}]
  %s8 = sld [smem:[#allocation0]]
  $region54: #{tpu_custom_call.1} parent=0
    _
  %s10 = ssub.s32 1, %s8
  %s11 = scalar_select 0, %s10, %s8
  $region1: #{tpu_custom_call.1} parent=0
    #allocation2 [shape = 'u8[4096]{0}', space=vmem, size = 0x1000, scoped, tag = 'input window, operand 0, single buffered']
    #allocation3 [shape = 's32[1]{0}', space=sflag, size = 0x4, scoped, tag = 'scoped memory for tpu_custom_call.1']
    #allocation4 [shape = 's32[1]{0}', space=sflag, size = 0x4, scoped, tag = 'scoped memory for tpu_custom_call.1']
    #allocation5 [shape = 'u8[65536]{0}', space=vmem, size = 0x10000, scoped, tag = 'input window, operand 1, single buffered']
    #allocation6 [shape = 's32[1]{0}', space=sflag, size = 0x4, scoped, tag = 'scoped memory for tpu_custom_call.1']
    #allocation7 [shape = 'u8[65536]{0}', space=vmem, size = 0x10000, scoped, tag = 'input window, operand 3, single buffered']
    #allocation8 [shape = 'u8[65536]{0}', space=vmem, size = 0x10000, scoped, tag = 'input window, operand 5, single buffered']
    #allocation9 [shape = 's32[1]{0}', space=sflag, size = 0x4, scoped, tag = 'scoped memory for tpu_custom_call.1']
    #allocation10 [shape = 'u8[4096]{0}', space=vmem, size = 0x1000, scoped, tag = 'output window, operand 0, single buffered']
    %12 = vsyncpa [#allocation3], 0
    %13 = vsyncpa [#allocation6], 0
    %14 = vsyncpa [#allocation9], 0
    %15 = vsyncpa [#allocation4], 0
    // Predicated region
    $region2: #{tpu_custom_call.1} parent=1 // pred_check
      _
    $region3: #{tpu_custom_call.1} parent=1 // pred_check_branch
      %17 = sbr.rel (0) target = $region5
    $region4: #{tpu_custom_call.1} parent=1 // pred_region
      %s19 = ssub.s32 128, 128
      %20 = vsyncadd [#allocation3], %s19
      %s22 = sshll.u32 [#allocation2], 4
      %s23 = int_to_ptr.vmem [resolvable:$true] %s22
      %25 = dma.hbm_to_vmem [thread:$0]  %s0, 128, %s23, [#allocation3]
    $region5: #{tpu_custom_call.1} parent=1 // pred_fallthru
      _
    // Predicated region
    $region6: #{tpu_custom_call.1} parent=1 // pred_check
      _
    $region7: #{tpu_custom_call.1} parent=1 // pred_check_branch
      %27 = sbr.rel (0) target = $region9
    $region8: #{tpu_custom_call.1} parent=1 // pred_region
      %s29 = ssub.s32 2048, 2048
      %30 = vsyncadd [#allocation6], %s29
      %s31 = sshll.u32 [#allocation5], 4
      %s32 = int_to_ptr.vmem [resolvable:$true] %s31
      %37 = dma.hbm_to_vmem [thread:$0]  %s1, 2048, %s32, [#allocation6], 128, 128, 8
    $region9: #{tpu_custom_call.1} parent=1 // pred_fallthru
      _
    // Predicated region
    $region10: #{tpu_custom_call.1} parent=1 // pred_check
      _
    $region11: #{tpu_custom_call.1} parent=1 // pred_check_branch
      %39 = sbr.rel (0) target = $region13
    $region12: #{tpu_custom_call.1} parent=1 // pred_region
      _
    $region13: #{tpu_custom_call.1} parent=1 // pred_fallthru
      _
    // Predicated region
    $region14: #{tpu_custom_call.1} parent=1 // pred_check
      _
    $region15: #{tpu_custom_call.1} parent=1 // pred_check_branch
      %41 = sbr.rel (0) target = $region17
    $region16: #{tpu_custom_call.1} parent=1 // pred_region
      %s43 = ssub.s32 2048, 2048
      %44 = vsyncadd [#allocation6], %s43
      %s45 = sshll.u32 [#allocation7], 4
      %s46 = int_to_ptr.vmem [resolvable:$true] %s45
      %51 = dma.hbm_to_vmem [thread:$0]  %s3, 2048, %s46, [#allocation6], 128, 128, 8
    $region17: #{tpu_custom_call.1} parent=1 // pred_fallthru
      _
    // Predicated region
    $region18: #{tpu_custom_call.1} parent=1 // pred_check
      _
    $region19: #{tpu_custom_call.1} parent=1 // pred_check_branch
      %53 = sbr.rel (0) target = $region21
    $region20: #{tpu_custom_call.1} parent=1 // pred_region
      _
    $region21: #{tpu_custom_call.1} parent=1 // pred_fallthru
      _
    // Predicated region
    $region22: #{tpu_custom_call.1} parent=1 // pred_check
      _
    $region23: #{tpu_custom_call.1} parent=1 // pred_check_branch
      %55 = sbr.rel (0) target = $region25
    $region24: #{tpu_custom_call.1} parent=1 // pred_region
      %s57 = ssub.s32 2048, 2048
      %58 = vsyncadd [#allocation9], %s57
      %s59 = sshll.u32 [#allocation8], 4
      %s60 = int_to_ptr.vmem [resolvable:$true] %s59
      %65 = dma.hbm_to_vmem [thread:$0]  %s5, 2048, %s60, [#allocation9], 128, 128, 8
    $region25: #{tpu_custom_call.1} parent=1 // pred_fallthru
      _
    // Predicated region
    $region26: #{tpu_custom_call.1} parent=1 // pred_check
      _
    $region27: #{tpu_custom_call.1} parent=1 // pred_check_branch
      %67 = sbr.rel (0) target = $region29
    $region28: #{tpu_custom_call.1} parent=1 // pred_region
      _
    $region29: #{tpu_custom_call.1} parent=1 // pred_fallthru
      _
    // Predicated region
    $region30: #{tpu_custom_call.1} parent=1 // pred_check
      _
    $region31: #{tpu_custom_call.1} parent=1 // pred_check_branch
      %69 = sbr.rel (0) target = $region33
    $region32: #{tpu_custom_call.1} parent=1 // pred_region
      %70 = dma.done [#allocation3], 128
    $region33: #{tpu_custom_call.1} parent=1 // pred_fallthru
      _
    // Predicated region
    $region34: #{tpu_custom_call.1} parent=1 // pred_check
      _
    $region35: #{tpu_custom_call.1} parent=1 // pred_check_branch
      %72 = sbr.rel (0) target = $region37
    $region36: #{tpu_custom_call.1} parent=1 // pred_region
      %73 = dma.done [#allocation6], 2048
    $region37: #{tpu_custom_call.1} parent=1 // pred_fallthru
      _
    // Predicated region
    $region38: #{tpu_custom_call.1} parent=1 // pred_check
      _
    $region39: #{tpu_custom_call.1} parent=1 // pred_check_branch
      %75 = sbr.rel (0) target = $region41
    $region40: #{tpu_custom_call.1} parent=1 // pred_region
      %76 = dma.done [#allocation6], 2048
    $region41: #{tpu_custom_call.1} parent=1 // pred_fallthru
      _
    // Predicated region
    $region42: #{tpu_custom_call.1} parent=1 // pred_check
      _
    $region43: #{tpu_custom_call.1} parent=1 // pred_check_branch
      %78 = sbr.rel (0) target = $region45
    $region44: #{tpu_custom_call.1} parent=1 // pred_region
      %79 = dma.done [#allocation9], 2048
    $region45: #{tpu_custom_call.1} parent=1 // pred_fallthru
      _
    %v80 = vld [vmem:[#allocation2] sm:$0xff]
    %v81 = vld [vmem:[#allocation5] sm:$0xff]
    %v82 = vld [vmem:[#allocation5 + $0x8] sm:$0xff]
    %v83 = vld [vmem:[#allocation5 + $0x10] sm:$0xff]
    %v84 = vld [vmem:[#allocation5 + $0x18] sm:$0xff]
    %v85 = vld [vmem:[#allocation5 + $0x20] sm:$0xff]
    %v86 = vld [vmem:[#allocation5 + $0x28] sm:$0xff]
    %v87 = vld [vmem:[#allocation5 + $0x30] sm:$0xff]
    %v88 = vld [vmem:[#allocation5 + $0x38] sm:$0xff]
    %v89 = vld [vmem:[#allocation5 + $0x40] sm:$0xff]
    %v90 = vld [vmem:[#allocation5 + $0x48] sm:$0xff]
    %v91 = vld [vmem:[#allocation5 + $0x50] sm:$0xff]
    %v92 = vld [vmem:[#allocation5 + $0x58] sm:$0xff]
    %v93 = vld [vmem:[#allocation5 + $0x60] sm:$0xff]
    %v94 = vld [vmem:[#allocation5 + $0x68] sm:$0xff]
    %v95 = vld [vmem:[#allocation5 + $0x70] sm:$0xff]
    %v96 = vld [vmem:[#allocation5 + $0x78] sm:$0xff]
    %v97 = vld [vmem:[%s2] sm:$0x1]
    %v99 = vlaneseq
    %v100 = vshrl.u32 %v99, 7
    %v101 = vsub.s32 0, %v100
    %v102 = vrot.slane %v97, %v101
    %104 = vmatprep.subr.mxu0 0.0
    %105 = vmatpush1.msra.mxu0 %v81
    %106 = vmatprep.subr.mxu0 0.0
    %107 = vmatpush1.msra.mxu0 %v82
    %108 = vmatprep.subr.mxu0 0.0
    %109 = vmatpush1.msra.mxu0 %v83
    %110 = vmatprep.subr.mxu0 0.0
    %111 = vmatpush1.msra.mxu0 %v84
    %112 = vmatprep.subr.mxu0 0.0
    %113 = vmatpush1.msra.mxu0 %v85
    %114 = vmatprep.subr.mxu0 0.0
    %115 = vmatpush1.msra.mxu0 %v86
    %116 = vmatprep.subr.mxu0 0.0
    %117 = vmatpush1.msra.mxu0 %v87
    %118 = vmatprep.subr.mxu0 0.0
    %119 = vmatpush1.msra.mxu0 %v88
    %120 = vmatprep.subr.mxu0 0.0
    %121 = vmatpush1.msra.mxu0 %v89
    %122 = vmatprep.subr.mxu0 0.0
    %123 = vmatpush1.msra.mxu0 %v90
    %124 = vmatprep.subr.mxu0 0.0
    %125 = vmatpush1.msra.mxu0 %v91
    %126 = vmatprep.subr.mxu0 0.0
    %127 = vmatpush1.msra.mxu0 %v92
    %128 = vmatprep.subr.mxu0 0.0
    %129 = vmatpush1.msra.mxu0 %v93
    %130 = vmatprep.subr.mxu0 0.0
    %131 = vmatpush1.msra.mxu0 %v94
    %132 = vmatprep.subr.mxu0 0.0
    %133 = vmatpush1.msra.mxu0 %v95
    %134 = vmatprep.subr.mxu0 0.0
    %135 = vmatpush1.msra.mxu0 %v96
    %136 = vmatprep.subr.mxu0 0.0
    %137 = vmatpush1.msra.mxu0 0.0
    %138 = vmatprep.subr.mxu0 0.0
    %139 = vmatpush1.msra.mxu0 0.0
    %140 = vmatprep.subr.mxu0 0.0
    %141 = vmatpush1.msra.mxu0 0.0
    %142 = vmatprep.subr.mxu0 0.0
    %143 = vmatpush1.msra.mxu0 0.0
    %144 = vmatprep.subr.mxu0 0.0
    %145 = vmatpush1.msra.mxu0 0.0
    %146 = vmatprep.subr.mxu0 0.0
    %147 = vmatpush1.msra.mxu0 0.0
    %148 = vmatprep.subr.mxu0 0.0
    %149 = vmatpush1.msra.mxu0 0.0
    %150 = vmatprep.subr.mxu0 0.0
    %151 = vmatpush1.msra.mxu0 0.0
    %152 = vmatprep.subr.mxu0 0.0
    %153 = vmatpush1.msra.mxu0 0.0
    %154 = vmatprep.subr.mxu0 0.0
    %155 = vmatpush1.msra.mxu0 0.0
    %156 = vmatprep.subr.mxu0 0.0
    %157 = vmatpush1.msra.mxu0 0.0
    %158 = vmatprep.subr.mxu0 0.0
    %159 = vmatpush1.msra.mxu0 0.0
    %160 = vmatprep.subr.mxu0 0.0
    %161 = vmatpush1.msra.mxu0 0.0
    %162 = vmatprep.subr.mxu0 0.0
    %163 = vmatpush1.msra.mxu0 0.0
    %164 = vmatprep.subr.mxu0 0.0
    %165 = vmatpush1.msra.mxu0 0.0
    %166 = vmatprep.subr.mxu0 0.0
    %167 = vmatpush1.msra.mxu0 0.0
    %168 = vmatprep.mubr.f32.mxu0 0.0
    %169 = vmatmul.mubr.f32.gmra.mrb[0].mxu0 %v80
    %v170 = vpop.f32.mrb[0].mxu0
    %v171 = vadd.f32 %v102, %v170
    %v172 = vpop.f32.mrb[0].mxu0
    %173 = vdwg.mxu0
    %v174 = vxor.u32 %v171, 2147483648
    %v175 = vmul.f32 %v174, 1.442695
    %v176 = vpow.pop %v175
    %v177 = vadd.f32 %v176, 1.0
    %v178 = vrcp.pop %v177
    %v179 = vmul.f32 1.0, %v178
    %v180 = vmul.f32 %v171, %v179
    %v181 = vld [vmem:[#allocation7] sm:$0xff]
    %v182 = vld [vmem:[#allocation7 + $0x8] sm:$0xff]
    %v183 = vld [vmem:[#allocation7 + $0x10] sm:$0xff]
    %v184 = vld [vmem:[#allocation7 + $0x18] sm:$0xff]
    %v185 = vld [vmem:[#allocation7 + $0x20] sm:$0xff]
    %v186 = vld [vmem:[#allocation7 + $0x28] sm:$0xff]
    %v187 = vld [vmem:[#allocation7 + $0x30] sm:$0xff]
    %v188 = vld [vmem:[#allocation7 + $0x38] sm:$0xff]
    %v189 = vld [vmem:[#allocation7 + $0x40] sm:$0xff]
    %v190 = vld [vmem:[#allocation7 + $0x48] sm:$0xff]
    %v191 = vld [vmem:[#allocation7 + $0x50] sm:$0xff]
    %v192 = vld [vmem:[#allocation7 + $0x58] sm:$0xff]
    %v193 = vld [vmem:[#allocation7 + $0x60] sm:$0xff]
    %v194 = vld [vmem:[#allocation7 + $0x68] sm:$0xff]
    %v195 = vld [vmem:[#allocation7 + $0x70] sm:$0xff]
    %v196 = vld [vmem:[#allocation7 + $0x78] sm:$0xff]
    %v197 = vld [vmem:[%s4] sm:$0x1]
    %v199 = vlaneseq
    %v200 = vshrl.u32 %v199, 7
    %v201 = vsub.s32 0, %v200
    %v202 = vrot.slane %v197, %v201
    %204 = vmatprep.subr.mxu0 0.0
    %205 = vmatpush1.msra.mxu0 %v181
    %206 = vmatprep.subr.mxu0 0.0
    %207 = vmatpush1.msra.mxu0 %v182
    %208 = vmatprep.subr.mxu0 0.0
    %209 = vmatpush1.msra.mxu0 %v183
    %210 = vmatprep.subr.mxu0 0.0
    %211 = vmatpush1.msra.mxu0 %v184
    %212 = vmatprep.subr.mxu0 0.0
    %213 = vmatpush1.msra.mxu0 %v185
    %214 = vmatprep.subr.mxu0 0.0
    %215 = vmatpush1.msra.mxu0 %v186
    %216 = vmatprep.subr.mxu0 0.0
    %217 = vmatpush1.msra.mxu0 %v187
    %218 = vmatprep.subr.mxu0 0.0
    %219 = vmatpush1.msra.mxu0 %v188
    %220 = vmatprep.subr.mxu0 0.0
    %221 = vmatpush1.msra.mxu0 %v189
    %222 = vmatprep.subr.mxu0 0.0
    %223 = vmatpush1.msra.mxu0 %v190
    %224 = vmatprep.subr.mxu0 0.0
    %225 = vmatpush1.msra.mxu0 %v191
    %226 = vmatprep.subr.mxu0 0.0
    %227 = vmatpush1.msra.mxu0 %v192
    %228 = vmatprep.subr.mxu0 0.0
    %229 = vmatpush1.msra.mxu0 %v193
    %230 = vmatprep.subr.mxu0 0.0
    %231 = vmatpush1.msra.mxu0 %v194
    %232 = vmatprep.subr.mxu0 0.0
    %233 = vmatpush1.msra.mxu0 %v195
    %234 = vmatprep.subr.mxu0 0.0
    %235 = vmatpush1.msra.mxu0 %v196
    %236 = vmatprep.subr.mxu0 0.0
    %237 = vmatpush1.msra.mxu0 0.0
    %238 = vmatprep.subr.mxu0 0.0
    %239 = vmatpush1.msra.mxu0 0.0
    %240 = vmatprep.subr.mxu0 0.0
    %241 = vmatpush1.msra.mxu0 0.0
    %242 = vmatprep.subr.mxu0 0.0
    %243 = vmatpush1.msra.mxu0 0.0
    %244 = vmatprep.subr.mxu0 0.0
    %245 = vmatpush1.msra.mxu0 0.0
    %246 = vmatprep.subr.mxu0 0.0
    %247 = vmatpush1.msra.mxu0 0.0
    %248 = vmatprep.subr.mxu0 0.0
    %249 = vmatpush1.msra.mxu0 0.0
    %250 = vmatprep.subr.mxu0 0.0
    %251 = vmatpush1.msra.mxu0 0.0
    %252 = vmatprep.subr.mxu0 0.0
    %253 = vmatpush1.msra.mxu0 0.0
    %254 = vmatprep.subr.mxu0 0.0
    %255 = vmatpush1.msra.mxu0 0.0
    %256 = vmatprep.subr.mxu0 0.0
    %257 = vmatpush1.msra.mxu0 0.0
    %258 = vmatprep.subr.mxu0 0.0
    %259 = vmatpush1.msra.mxu0 0.0
    %260 = vmatprep.subr.mxu0 0.0
    %261 = vmatpush1.msra.mxu0 0.0
    %262 = vmatprep.subr.mxu0 0.0
    %263 = vmatpush1.msra.mxu0 0.0
    %264 = vmatprep.subr.mxu0 0.0
    %265 = vmatpush1.msra.mxu0 0.0
    %266 = vmatprep.subr.mxu0 0.0
    %267 = vmatpush1.msra.mxu0 0.0
    %268 = vmatprep.mubr.f32.mxu0 0.0
    %269 = vmatmul.mubr.f32.gmra.mrb[0].mxu0 %v180
    %v270 = vpop.f32.mrb[0].mxu0
    %v271 = vadd.f32 %v202, %v270
    %v272 = vpop.f32.mrb[0].mxu0
    %273 = vdwg.mxu0
    %v274 = vxor.u32 %v271, 2147483648
    %v275 = vmul.f32 %v274, 1.442695
    %v276 = vpow.pop %v275
    %v277 = vadd.f32 %v276, 1.0
    %v278 = vrcp.pop %v277
    %v279 = vmul.f32 1.0, %v278
    %v280 = vmul.f32 %v271, %v279
    %v281 = vld [vmem:[#allocation8] sm:$0xff]
    %v282 = vld [vmem:[#allocation8 + $0x8] sm:$0xff]
    %v283 = vld [vmem:[#allocation8 + $0x10] sm:$0xff]
    %v284 = vld [vmem:[#allocation8 + $0x18] sm:$0xff]
    %v285 = vld [vmem:[#allocation8 + $0x20] sm:$0xff]
    %v286 = vld [vmem:[#allocation8 + $0x28] sm:$0xff]
    %v287 = vld [vmem:[#allocation8 + $0x30] sm:$0xff]
    %v288 = vld [vmem:[#allocation8 + $0x38] sm:$0xff]
    %v289 = vld [vmem:[#allocation8 + $0x40] sm:$0xff]
    %v290 = vld [vmem:[#allocation8 + $0x48] sm:$0xff]
    %v291 = vld [vmem:[#allocation8 + $0x50] sm:$0xff]
    %v292 = vld [vmem:[#allocation8 + $0x58] sm:$0xff]
    %v293 = vld [vmem:[#allocation8 + $0x60] sm:$0xff]
    %v294 = vld [vmem:[#allocation8 + $0x68] sm:$0xff]
    %v295 = vld [vmem:[#allocation8 + $0x70] sm:$0xff]
    %v296 = vld [vmem:[#allocation8 + $0x78] sm:$0xff]
    %v297 = vld [vmem:[%s6] sm:$0x1]
    %v299 = vlaneseq
    %v300 = vshrl.u32 %v299, 7
    %v301 = vsub.s32 0, %v300
    %v302 = vrot.slane %v297, %v301
    %304 = vmatprep.subr.mxu0 0.0
    %305 = vmatpush1.msra.mxu0 %v281
    %306 = vmatprep.subr.mxu0 0.0
    %307 = vmatpush1.msra.mxu0 %v282
    %308 = vmatprep.subr.mxu0 0.0
    %309 = vmatpush1.msra.mxu0 %v283
    %310 = vmatprep.subr.mxu0 0.0
    %311 = vmatpush1.msra.mxu0 %v284
    %312 = vmatprep.subr.mxu0 0.0
    %313 = vmatpush1.msra.mxu0 %v285
    %314 = vmatprep.subr.mxu0 0.0
    %315 = vmatpush1.msra.mxu0 %v286
    %316 = vmatprep.subr.mxu0 0.0
    %317 = vmatpush1.msra.mxu0 %v287
    %318 = vmatprep.subr.mxu0 0.0
    %319 = vmatpush1.msra.mxu0 %v288
    %320 = vmatprep.subr.mxu0 0.0
    %321 = vmatpush1.msra.mxu0 %v289
    %322 = vmatprep.subr.mxu0 0.0
    %323 = vmatpush1.msra.mxu0 %v290
    %324 = vmatprep.subr.mxu0 0.0
    %325 = vmatpush1.msra.mxu0 %v291
    %326 = vmatprep.subr.mxu0 0.0
    %327 = vmatpush1.msra.mxu0 %v292
    %328 = vmatprep.subr.mxu0 0.0
    %329 = vmatpush1.msra.mxu0 %v293
    %330 = vmatprep.subr.mxu0 0.0
    %331 = vmatpush1.msra.mxu0 %v294
    %332 = vmatprep.subr.mxu0 0.0
    %333 = vmatpush1.msra.mxu0 %v295
    %334 = vmatprep.subr.mxu0 0.0
    %335 = vmatpush1.msra.mxu0 %v296
    %336 = vmatprep.subr.mxu0 0.0
    %337 = vmatpush1.msra.mxu0 0.0
    %338 = vmatprep.subr.mxu0 0.0
    %339 = vmatpush1.msra.mxu0 0.0
    %340 = vmatprep.subr.mxu0 0.0
    %341 = vmatpush1.msra.mxu0 0.0
    %342 = vmatprep.subr.mxu0 0.0
    %343 = vmatpush1.msra.mxu0 0.0
    %344 = vmatprep.subr.mxu0 0.0
    %345 = vmatpush1.msra.mxu0 0.0
    %346 = vmatprep.subr.mxu0 0.0
    %347 = vmatpush1.msra.mxu0 0.0
    %348 = vmatprep.subr.mxu0 0.0
    %349 = vmatpush1.msra.mxu0 0.0
    %350 = vmatprep.subr.mxu0 0.0
    %351 = vmatpush1.msra.mxu0 0.0
    %352 = vmatprep.subr.mxu0 0.0
    %353 = vmatpush1.msra.mxu0 0.0
    %354 = vmatprep.subr.mxu0 0.0
    %355 = vmatpush1.msra.mxu0 0.0
    %356 = vmatprep.subr.mxu0 0.0
    %357 = vmatpush1.msra.mxu0 0.0
    %358 = vmatprep.subr.mxu0 0.0
    %359 = vmatpush1.msra.mxu0 0.0
    %360 = vmatprep.subr.mxu0 0.0
    %361 = vmatpush1.msra.mxu0 0.0
    %362 = vmatprep.subr.mxu0 0.0
    %363 = vmatpush1.msra.mxu0 0.0
    %364 = vmatprep.subr.mxu0 0.0
    %365 = vmatpush1.msra.mxu0 0.0
    %366 = vmatprep.subr.mxu0 0.0
    %367 = vmatpush1.msra.mxu0 0.0
    %368 = vmatprep.mubr.f32.mxu0 0.0
    %369 = vmatmul.mubr.f32.gmra.mrb[0].mxu0 %v280
    %v370 = vpop.f32.mrb[0].mxu0
    %v371 = vadd.f32 %v302, %v370
    %v372 = vpop.f32.mrb[0].mxu0
    %373 = vdwg.mxu0
    %374 = vst [vmem:[#allocation10] sm:$0xff] %v371
    // Predicated region
    $region46: #{tpu_custom_call.1} parent=1 // pred_check
      _
    $region47: #{tpu_custom_call.1} parent=1 // pred_check_branch
      %376 = sbr.rel (0) target = $region49
    $region48: #{tpu_custom_call.1} parent=1 // pred_region
      %s378 = ssub.s32 128, 128
      %379 = vsyncadd [#allocation4], %s378
      %s381 = sshll.u32 [#allocation10], 4
      %s382 = int_to_ptr.vmem [resolvable:$true] %s381
      %384 = dma.vmem_to_hbm [thread:$0]  %s382, 128, %s7, [#allocation4]
    $region49: #{tpu_custom_call.1} parent=1 // pred_fallthru
      _
    // Predicated region
    $region50: #{tpu_custom_call.1} parent=1 // pred_check
      _
    $region51: #{tpu_custom_call.1} parent=1 // pred_check_branch
      %386 = sbr.rel (0) target = $region53
    $region52: #{tpu_custom_call.1} parent=1 // pred_region
      %387 = dma.done [#allocation4], 128
    $region53: #{tpu_custom_call.1} parent=1 // pred_fallthru
      _
    %388 = vsyncpa [#allocation3], 1
    %389 = vsyncpa [#allocation6], 1
    %390 = vsyncpa [#allocation9], 1
    %391 = vsyncpa [#allocation4], 1

// kernel: tpu_custom_call.1
$region0: #{tpu_custom_call.1}
  #allocation0 [shape = 'u32[]', space=smem, size = 0x4, offset = 0x4, fixed_abs, tag = 'smem constant byte address 0x4 - core index']
  #allocation1 [shape = 'u32[144,128]{1,0:T(1,128)}', space=vmem, size = 0x12000, scoped, tag = 'internal scratch']
  %s0 = inlined_call_operand.hbm [shape: f32[8,128], index: 0, kind: input, shape index: {}]
  %s1 = inlined_call_operand.hbm [shape: f32[128,128], index: 1, kind: input, shape index: {}]
  %s2 = inlined_call_operand.vmem [shape: f32[1,128], index: 2, kind: input, shape index: {}]
  %s3 = inlined_call_operand.hbm [shape: f32[128,128], index: 3, kind: input, shape index: {}]
  %s4 = inlined_call_operand.vmem [shape: f32[1,128], index: 4, kind: input, shape index: {}]
  %s5 = inlined_call_operand.hbm [shape: f32[128,128], index: 5, kind: input, shape index: {}]
  %s6 = inlined_call_operand.vmem [shape: f32[1,128], index: 6, kind: input, shape index: {}]
  %s7 = inlined_call_operand.hbm [shape: f32[8,128], index: 7, kind: output, shape index: {}]
  %s8 = sld [smem:[#allocation0]]
  $region54: #{tpu_custom_call.1} parent=0
    _
  %s10 = ssub.s32 1, %s8
  %s11 = scalar_select 0, %s10, %s8
  $region1: #{tpu_custom_call.1} parent=0
    #allocation2 [shape = 'u8[4096]{0}', space=vmem, size = 0x1000, scoped, tag = 'input window, operand 0, single buffered']
    #allocation3 [shape = 's32[1]{0}', space=sflag, size = 0x4, scoped, tag = 'scoped memory for tpu_custom_call.1']
    #allocation4 [shape = 's32[1]{0}', space=sflag, size = 0x4, scoped, tag = 'scoped memory for tpu_custom_call.1']
    #allocation5 [shape = 'u8[65536]{0}', space=vmem, size = 0x10000, scoped, tag = 'input window, operand 1, single buffered']
    #allocation6 [shape = 's32[1]{0}', space=sflag, size = 0x4, scoped, tag = 'scoped memory for tpu_custom_call.1']
    #allocation7 [shape = 'u8[65536]{0}', space=vmem, size = 0x10000, scoped, tag = 'input window, operand 3, single buffered']
    #allocation8 [shape = 'u8[65536]{0}', space=vmem, size = 0x10000, scoped, tag = 'input window, operand 5, single buffered']
    #allocation9 [shape = 's32[1]{0}', space=sflag, size = 0x4, scoped, tag = 'scoped memory for tpu_custom_call.1']
    #allocation10 [shape = 'u8[4096]{0}', space=vmem, size = 0x1000, scoped, tag = 'output window, operand 0, single buffered']
    %12 = vsyncpa [#allocation3], 0
    %13 = vsyncpa [#allocation6], 0
    %14 = vsyncpa [#allocation9], 0
    %15 = vsyncpa [#allocation4], 0
    // Predicated region
    $region2: #{tpu_custom_call.1} parent=1 // pred_check
      _
    $region3: #{tpu_custom_call.1} parent=1 // pred_check_branch
      %17 = sbr.rel (0) target = $region5
    $region4: #{tpu_custom_call.1} parent=1 // pred_region
      %s19 = ssub.s32 128, 128
      %20 = vsyncadd [#allocation3], %s19
      %s22 = sshll.u32 [#allocation2], 4
      %s23 = int_to_ptr.vmem [resolvable:$true] %s22
      %25 = dma.hbm_to_vmem [thread:$0]  %s0, 128, %s23, [#allocation3]
    $region5: #{tpu_custom_call.1} parent=1 // pred_fallthru
      _
    // Predicated region
    $region6: #{tpu_custom_call.1} parent=1 // pred_check
      _
    $region7: #{tpu_custom_call.1} parent=1 // pred_check_branch
      %27 = sbr.rel (0) target = $region9
    $region8: #{tpu_custom_call.1} parent=1 // pred_region
      %s29 = ssub.s32 2048, 2048
      %30 = vsyncadd [#allocation6], %s29
      %s31 = sshll.u32 [#allocation5], 4
      %s32 = int_to_ptr.vmem [resolvable:$true] %s31
      %37 = dma.hbm_to_vmem [thread:$0]  %s1, 2048, %s32, [#allocation6], 128, 128, 8
    $region9: #{tpu_custom_call.1} parent=1 // pred_fallthru
      _
    // Predicated region
    $region10: #{tpu_custom_call.1} parent=1 // pred_check
      _
    $region11: #{tpu_custom_call.1} parent=1 // pred_check_branch
      %39 = sbr.rel (0) target = $region13
    $region12: #{tpu_custom_call.1} parent=1 // pred_region
      _
    $region13: #{tpu_custom_call.1} parent=1 // pred_fallthru
      _
    // Predicated region
    $region14: #{tpu_custom_call.1} parent=1 // pred_check
      _
    $region15: #{tpu_custom_call.1} parent=1 // pred_check_branch
      %41 = sbr.rel (0) target = $region17
    $region16: #{tpu_custom_call.1} parent=1 // pred_region
      %s43 = ssub.s32 2048, 2048
      %44 = vsyncadd [#allocation6], %s43
      %s45 = sshll.u32 [#allocation7], 4
      %s46 = int_to_ptr.vmem [resolvable:$true] %s45
      %51 = dma.hbm_to_vmem [thread:$0]  %s3, 2048, %s46, [#allocation6], 128, 128, 8
    $region17: #{tpu_custom_call.1} parent=1 // pred_fallthru
      _
    // Predicated region
    $region18: #{tpu_custom_call.1} parent=1 // pred_check
      _
    $region19: #{tpu_custom_call.1} parent=1 // pred_check_branch
      %53 = sbr.rel (0) target = $region21
    $region20: #{tpu_custom_call.1} parent=1 // pred_region
      _
    $region21: #{tpu_custom_call.1} parent=1 // pred_fallthru
      _
    // Predicated region
    $region22: #{tpu_custom_call.1} parent=1 // pred_check
      _
    $region23: #{tpu_custom_call.1} parent=1 // pred_check_branch
      %55 = sbr.rel (0) target = $region25
    $region24: #{tpu_custom_call.1} parent=1 // pred_region
      %s57 = ssub.s32 2048, 2048
      %58 = vsyncadd [#allocation9], %s57
      %s59 = sshll.u32 [#allocation8], 4
      %s60 = int_to_ptr.vmem [resolvable:$true] %s59
      %65 = dma.hbm_to_vmem [thread:$0]  %s5, 2048, %s60, [#allocation9], 128, 128, 8
    $region25: #{tpu_custom_call.1} parent=1 // pred_fallthru
      _
    // Predicated region
    $region26: #{tpu_custom_call.1} parent=1 // pred_check
      _
    $region27: #{tpu_custom_call.1} parent=1 // pred_check_branch
      %67 = sbr.rel (0) target = $region29
    $region28: #{tpu_custom_call.1} parent=1 // pred_region
      _
    $region29: #{tpu_custom_call.1} parent=1 // pred_fallthru
      _
    // Predicated region
    $region30: #{tpu_custom_call.1} parent=1 // pred_check
      _
    $region31: #{tpu_custom_call.1} parent=1 // pred_check_branch
      %69 = sbr.rel (0) target = $region33
    $region32: #{tpu_custom_call.1} parent=1 // pred_region
      %70 = dma.done [#allocation3], 128
    $region33: #{tpu_custom_call.1} parent=1 // pred_fallthru
      _
    // Predicated region
    $region34: #{tpu_custom_call.1} parent=1 // pred_check
      _
    $region35: #{tpu_custom_call.1} parent=1 // pred_check_branch
      %72 = sbr.rel (0) target = $region37
    $region36: #{tpu_custom_call.1} parent=1 // pred_region
      %73 = dma.done [#allocation6], 2048
    $region37: #{tpu_custom_call.1} parent=1 // pred_fallthru
      _
    // Predicated region
    $region38: #{tpu_custom_call.1} parent=1 // pred_check
      _
    $region39: #{tpu_custom_call.1} parent=1 // pred_check_branch
      %75 = sbr.rel (0) target = $region41
    $region40: #{tpu_custom_call.1} parent=1 // pred_region
      %76 = dma.done [#allocation6], 2048
    $region41: #{tpu_custom_call.1} parent=1 // pred_fallthru
      _
    // Predicated region
    $region42: #{tpu_custom_call.1} parent=1 // pred_check
      _
    $region43: #{tpu_custom_call.1} parent=1 // pred_check_branch
      %78 = sbr.rel (0) target = $region45
    $region44: #{tpu_custom_call.1} parent=1 // pred_region
      %79 = dma.done [#allocation9], 2048
    $region45: #{tpu_custom_call.1} parent=1 // pred_fallthru
      _
    %v80 = vld [vmem:[#allocation2] sm:$0xff]
    %v81 = vld [vmem:[#allocation5] sm:$0xff]
    %v82 = vld [vmem:[#allocation5 + $0x8] sm:$0xff]
    %v83 = vld [vmem:[#allocation5 + $0x10] sm:$0xff]
    %v84 = vld [vmem:[#allocation5 + $0x18] sm:$0xff]
    %v85 = vld [vmem:[#allocation5 + $0x20] sm:$0xff]
    %v86 = vld [vmem:[#allocation5 + $0x28] sm:$0xff]
    %v87 = vld [vmem:[#allocation5 + $0x30] sm:$0xff]
    %v88 = vld [vmem:[#allocation5 + $0x38] sm:$0xff]
    %v89 = vld [vmem:[#allocation5 + $0x40] sm:$0xff]
    %v90 = vld [vmem:[#allocation5 + $0x48] sm:$0xff]
    %v91 = vld [vmem:[#allocation5 + $0x50] sm:$0xff]
    %v92 = vld [vmem:[#allocation5 + $0x58] sm:$0xff]
    %v93 = vld [vmem:[#allocation5 + $0x60] sm:$0xff]
    %v94 = vld [vmem:[#allocation5 + $0x68] sm:$0xff]
    %v95 = vld [vmem:[#allocation5 + $0x70] sm:$0xff]
    %v96 = vld [vmem:[#allocation5 + $0x78] sm:$0xff]
    %v97 = vld [vmem:[%s2] sm:$0x1]
    %v99 = vlaneseq
    %v100 = vshrl.u32 %v99, 7
    %v101 = vsub.s32 0, %v100
    %v102 = vrot.slane %v97, %v101
    %104 = vmatprep.subr.mxu0 0.0
    %105 = vmatpush1.msra.mxu0 %v81
    %106 = vmatprep.subr.mxu0 0.0
    %107 = vmatpush1.msra.mxu0 %v82
    %108 = vmatprep.subr.mxu0 0.0
    %109 = vmatpush1.msra.mxu0 %v83
    %110 = vmatprep.subr.mxu0 0.0
    %111 = vmatpush1.msra.mxu0 %v84
    %112 = vmatprep.subr.mxu0 0.0
    %113 = vmatpush1.msra.mxu0 %v85
    %114 = vmatprep.subr.mxu0 0.0
    %115 = vmatpush1.msra.mxu0 %v86
    %116 = vmatprep.subr.mxu0 0.0
    %117 = vmatpush1.msra.mxu0 %v87
    %118 = vmatprep.subr.mxu0 0.0
    %119 = vmatpush1.msra.mxu0 %v88
    %120 = vmatprep.subr.mxu0 0.0
    %121 = vmatpush1.msra.mxu0 %v89
    %122 = vmatprep.subr.mxu0 0.0
    %123 = vmatpush1.msra.mxu0 %v90
    %124 = vmatprep.subr.mxu0 0.0
    %125 = vmatpush1.msra.mxu0 %v91
    %126 = vmatprep.subr.mxu0 0.0
    %127 = vmatpush1.msra.mxu0 %v92
    %128 = vmatprep.subr.mxu0 0.0
    %129 = vmatpush1.msra.mxu0 %v93
    %130 = vmatprep.subr.mxu0 0.0
    %131 = vmatpush1.msra.mxu0 %v94
    %132 = vmatprep.subr.mxu0 0.0
    %133 = vmatpush1.msra.mxu0 %v95
    %134 = vmatprep.subr.mxu0 0.0
    %135 = vmatpush1.msra.mxu0 %v96
    %136 = vmatprep.subr.mxu0 0.0
    %137 = vmatpush1.msra.mxu0 0.0
    %138 = vmatprep.subr.mxu0 0.0
    %139 = vmatpush1.msra.mxu0 0.0
    %140 = vmatprep.subr.mxu0 0.0
    %141 = vmatpush1.msra.mxu0 0.0
    %142 = vmatprep.subr.mxu0 0.0
    %143 = vmatpush1.msra.mxu0 0.0
    %144 = vmatprep.subr.mxu0 0.0
    %145 = vmatpush1.msra.mxu0 0.0
    %146 = vmatprep.subr.mxu0 0.0
    %147 = vmatpush1.msra.mxu0 0.0
    %148 = vmatprep.subr.mxu0 0.0
    %149 = vmatpush1.msra.mxu0 0.0
    %150 = vmatprep.subr.mxu0 0.0
    %151 = vmatpush1.msra.mxu0 0.0
    %152 = vmatprep.subr.mxu0 0.0
    %153 = vmatpush1.msra.mxu0 0.0
    %154 = vmatprep.subr.mxu0 0.0
    %155 = vmatpush1.msra.mxu0 0.0
    %156 = vmatprep.subr.mxu0 0.0
    %157 = vmatpush1.msra.mxu0 0.0
    %158 = vmatprep.subr.mxu0 0.0
    %159 = vmatpush1.msra.mxu0 0.0
    %160 = vmatprep.subr.mxu0 0.0
    %161 = vmatpush1.msra.mxu0 0.0
    %162 = vmatprep.subr.mxu0 0.0
    %163 = vmatpush1.msra.mxu0 0.0
    %164 = vmatprep.subr.mxu0 0.0
    %165 = vmatpush1.msra.mxu0 0.0
    %166 = vmatprep.subr.mxu0 0.0
    %167 = vmatpush1.msra.mxu0 0.0
    %168 = vmatprep.mubr.f32.mxu0 0.0
    %169 = vmatmul.mubr.f32.gmra.mrb[0].mxu0 %v80
    %v170 = vpop.f32.mrb[0].mxu0
    %v171 = vadd.f32 %v102, %v170
    %v172 = vpop.f32.mrb[0].mxu0
    %173 = vdwg.mxu0
    %v174 = vxor.u32 %v171, 2147483648
    %v175 = vmul.f32 %v174, 1.442695
    %v176 = vpow.pop %v175
    %v177 = vadd.f32 %v176, 1.0
    %v178 = vrcp.pop %v177
    %v179 = vmul.f32 1.0, %v178
    %v180 = vmul.f32 %v171, %v179
    %v181 = vld [vmem:[#allocation7] sm:$0xff]
    %v182 = vld [vmem:[#allocation7 + $0x8] sm:$0xff]
    %v183 = vld [vmem:[#allocation7 + $0x10] sm:$0xff]
    %v184 = vld [vmem:[#allocation7 + $0x18] sm:$0xff]
    %v185 = vld [vmem:[#allocation7 + $0x20] sm:$0xff]
    %v186 = vld [vmem:[#allocation7 + $0x28] sm:$0xff]
    %v187 = vld [vmem:[#allocation7 + $0x30] sm:$0xff]
    %v188 = vld [vmem:[#allocation7 + $0x38] sm:$0xff]
    %v189 = vld [vmem:[#allocation7 + $0x40] sm:$0xff]
    %v190 = vld [vmem:[#allocation7 + $0x48] sm:$0xff]
    %v191 = vld [vmem:[#allocation7 + $0x50] sm:$0xff]
    %v192 = vld [vmem:[#allocation7 + $0x58] sm:$0xff]
    %v193 = vld [vmem:[#allocation7 + $0x60] sm:$0xff]
    %v194 = vld [vmem:[#allocation7 + $0x68] sm:$0xff]
    %v195 = vld [vmem:[#allocation7 + $0x70] sm:$0xff]
    %v196 = vld [vmem:[#allocation7 + $0x78] sm:$0xff]
    %v197 = vld [vmem:[%s4] sm:$0x1]
    %v199 = vlaneseq
    %v200 = vshrl.u32 %v199, 7
    %v201 = vsub.s32 0, %v200
    %v202 = vrot.slane %v197, %v201
    %204 = vmatprep.subr.mxu0 0.0
    %205 = vmatpush1.msra.mxu0 %v181
    %206 = vmatprep.subr.mxu0 0.0
    %207 = vmatpush1.msra.mxu0 %v182
    %208 = vmatprep.subr.mxu0 0.0
    %209 = vmatpush1.msra.mxu0 %v183
    %210 = vmatprep.subr.mxu0 0.0
    %211 = vmatpush1.msra.mxu0 %v184
    %212 = vmatprep.subr.mxu0 0.0
    %213 = vmatpush1.msra.mxu0 %v185
    %214 = vmatprep.subr.mxu0 0.0
    %215 = vmatpush1.msra.mxu0 %v186
    %216 = vmatprep.subr.mxu0 0.0
    %217 = vmatpush1.msra.mxu0 %v187
    %218 = vmatprep.subr.mxu0 0.0
    %219 = vmatpush1.msra.mxu0 %v188
    %220 = vmatprep.subr.mxu0 0.0
    %221 = vmatpush1.msra.mxu0 %v189
    %222 = vmatprep.subr.mxu0 0.0
    %223 = vmatpush1.msra.mxu0 %v190
    %224 = vmatprep.subr.mxu0 0.0
    %225 = vmatpush1.msra.mxu0 %v191
    %226 = vmatprep.subr.mxu0 0.0
    %227 = vmatpush1.msra.mxu0 %v192
    %228 = vmatprep.subr.mxu0 0.0
    %229 = vmatpush1.msra.mxu0 %v193
    %230 = vmatprep.subr.mxu0 0.0
    %231 = vmatpush1.msra.mxu0 %v194
    %232 = vmatprep.subr.mxu0 0.0
    %233 = vmatpush1.msra.mxu0 %v195
    %234 = vmatprep.subr.mxu0 0.0
    %235 = vmatpush1.msra.mxu0 %v196
    %236 = vmatprep.subr.mxu0 0.0
    %237 = vmatpush1.msra.mxu0 0.0
    %238 = vmatprep.subr.mxu0 0.0
    %239 = vmatpush1.msra.mxu0 0.0
    %240 = vmatprep.subr.mxu0 0.0
    %241 = vmatpush1.msra.mxu0 0.0
    %242 = vmatprep.subr.mxu0 0.0
    %243 = vmatpush1.msra.mxu0 0.0
    %244 = vmatprep.subr.mxu0 0.0
    %245 = vmatpush1.msra.mxu0 0.0
    %246 = vmatprep.subr.mxu0 0.0
    %247 = vmatpush1.msra.mxu0 0.0
    %248 = vmatprep.subr.mxu0 0.0
    %249 = vmatpush1.msra.mxu0 0.0
    %250 = vmatprep.subr.mxu0 0.0
    %251 = vmatpush1.msra.mxu0 0.0
    %252 = vmatprep.subr.mxu0 0.0
    %253 = vmatpush1.msra.mxu0 0.0
    %254 = vmatprep.subr.mxu0 0.0
    %255 = vmatpush1.msra.mxu0 0.0
    %256 = vmatprep.subr.mxu0 0.0
    %257 = vmatpush1.msra.mxu0 0.0
    %258 = vmatprep.subr.mxu0 0.0
    %259 = vmatpush1.msra.mxu0 0.0
    %260 = vmatprep.subr.mxu0 0.0
    %261 = vmatpush1.msra.mxu0 0.0
    %262 = vmatprep.subr.mxu0 0.0
    %263 = vmatpush1.msra.mxu0 0.0
    %264 = vmatprep.subr.mxu0 0.0
    %265 = vmatpush1.msra.mxu0 0.0
    %266 = vmatprep.subr.mxu0 0.0
    %267 = vmatpush1.msra.mxu0 0.0
    %268 = vmatprep.mubr.f32.mxu0 0.0
    %269 = vmatmul.mubr.f32.gmra.mrb[0].mxu0 %v180
    %v270 = vpop.f32.mrb[0].mxu0
    %v271 = vadd.f32 %v202, %v270
    %v272 = vpop.f32.mrb[0].mxu0
    %273 = vdwg.mxu0
    %v274 = vxor.u32 %v271, 2147483648
    %v275 = vmul.f32 %v274, 1.442695
    %v276 = vpow.pop %v275
    %v277 = vadd.f32 %v276, 1.0
    %v278 = vrcp.pop %v277
    %v279 = vmul.f32 1.0, %v278
    %v280 = vmul.f32 %v271, %v279
    %v281 = vld [vmem:[#allocation8] sm:$0xff]
    %v282 = vld [vmem:[#allocation8 + $0x8] sm:$0xff]
    %v283 = vld [vmem:[#allocation8 + $0x10] sm:$0xff]
    %v284 = vld [vmem:[#allocation8 + $0x18] sm:$0xff]
    %v285 = vld [vmem:[#allocation8 + $0x20] sm:$0xff]
    %v286 = vld [vmem:[#allocation8 + $0x28] sm:$0xff]
    %v287 = vld [vmem:[#allocation8 + $0x30] sm:$0xff]
    %v288 = vld [vmem:[#allocation8 + $0x38] sm:$0xff]
    %v289 = vld [vmem:[#allocation8 + $0x40] sm:$0xff]
    %v290 = vld [vmem:[#allocation8 + $0x48] sm:$0xff]
    %v291 = vld [vmem:[#allocation8 + $0x50] sm:$0xff]
    %v292 = vld [vmem:[#allocation8 + $0x58] sm:$0xff]
    %v293 = vld [vmem:[#allocation8 + $0x60] sm:$0xff]
    %v294 = vld [vmem:[#allocation8 + $0x68] sm:$0xff]
    %v295 = vld [vmem:[#allocation8 + $0x70] sm:$0xff]
    %v296 = vld [vmem:[#allocation8 + $0x78] sm:$0xff]
    %v297 = vld [vmem:[%s6] sm:$0x1]
    %v299 = vlaneseq
    %v300 = vshrl.u32 %v299, 7
    %v301 = vsub.s32 0, %v300
    %v302 = vrot.slane %v297, %v301
    %304 = vmatprep.subr.mxu0 0.0
    %305 = vmatpush1.msra.mxu0 %v281
    %306 = vmatprep.subr.mxu0 0.0
    %307 = vmatpush1.msra.mxu0 %v282
    %308 = vmatprep.subr.mxu0 0.0
    %309 = vmatpush1.msra.mxu0 %v283
    %310 = vmatprep.subr.mxu0 0.0
    %311 = vmatpush1.msra.mxu0 %v284
    %312 = vmatprep.subr.mxu0 0.0
    %313 = vmatpush1.msra.mxu0 %v285
    %314 = vmatprep.subr.mxu0 0.0
    %315 = vmatpush1.msra.mxu0 %v286
    %316 = vmatprep.subr.mxu0 0.0
    %317 = vmatpush1.msra.mxu0 %v287
    %318 = vmatprep.subr.mxu0 0.0
    %319 = vmatpush1.msra.mxu0 %v288
    %320 = vmatprep.subr.mxu0 0.0
    %321 = vmatpush1.msra.mxu0 %v289
    %322 = vmatprep.subr.mxu0 0.0
    %323 = vmatpush1.msra.mxu0 %v290
    %324 = vmatprep.subr.mxu0 0.0
    %325 = vmatpush1.msra.mxu0 %v291
    %326 = vmatprep.subr.mxu0 0.0
    %327 = vmatpush1.msra.mxu0 %v292
    %328 = vmatprep.subr.mxu0 0.0
    %329 = vmatpush1.msra.mxu0 %v293
    %330 = vmatprep.subr.mxu0 0.0
    %331 = vmatpush1.msra.mxu0 %v294
    %332 = vmatprep.subr.mxu0 0.0
    %333 = vmatpush1.msra.mxu0 %v295
    %334 = vmatprep.subr.mxu0 0.0
    %335 = vmatpush1.msra.mxu0 %v296
    %336 = vmatprep.subr.mxu0 0.0
    %337 = vmatpush1.msra.mxu0 0.0
    %338 = vmatprep.subr.mxu0 0.0
    %339 = vmatpush1.msra.mxu0 0.0
    %340 = vmatprep.subr.mxu0 0.0
    %341 = vmatpush1.msra.mxu0 0.0
    %342 = vmatprep.subr.mxu0 0.0
    %343 = vmatpush1.msra.mxu0 0.0
    %344 = vmatprep.subr.mxu0 0.0
    %345 = vmatpush1.msra.mxu0 0.0
    %346 = vmatprep.subr.mxu0 0.0
    %347 = vmatpush1.msra.mxu0 0.0
    %348 = vmatprep.subr.mxu0 0.0
    %349 = vmatpush1.msra.mxu0 0.0
    %350 = vmatprep.subr.mxu0 0.0
    %351 = vmatpush1.msra.mxu0 0.0
    %352 = vmatprep.subr.mxu0 0.0
    %353 = vmatpush1.msra.mxu0 0.0
    %354 = vmatprep.subr.mxu0 0.0
    %355 = vmatpush1.msra.mxu0 0.0
    %356 = vmatprep.subr.mxu0 0.0
    %357 = vmatpush1.msra.mxu0 0.0
    %358 = vmatprep.subr.mxu0 0.0
    %359 = vmatpush1.msra.mxu0 0.0
    %360 = vmatprep.subr.mxu0 0.0
    %361 = vmatpush1.msra.mxu0 0.0
    %362 = vmatprep.subr.mxu0 0.0
    %363 = vmatpush1.msra.mxu0 0.0
    %364 = vmatprep.subr.mxu0 0.0
    %365 = vmatpush1.msra.mxu0 0.0
    %366 = vmatprep.subr.mxu0 0.0
    %367 = vmatpush1.msra.mxu0 0.0
    %368 = vmatprep.mubr.f32.mxu0 0.0
    %369 = vmatmul.mubr.f32.gmra.mrb[0].mxu0 %v280
    %v370 = vpop.f32.mrb[0].mxu0
    %v371 = vadd.f32 %v302, %v370
    %v372 = vpop.f32.mrb[0].mxu0
    %373 = vdwg.mxu0
    %374 = vst [vmem:[#allocation10] sm:$0xff] %v371
    // Predicated region
    $region46: #{tpu_custom_call.1} parent=1 // pred_check
      _
    $region47: #{tpu_custom_call.1} parent=1 // pred_check_branch
      %376 = sbr.rel (0) target = $region49
    $region48: #{tpu_custom_call.1} parent=1 // pred_region
      %s378 = ssub.s32 128, 128
      %379 = vsyncadd [#allocation4], %s378
      %s381 = sshll.u32 [#allocation10], 4
      %s382 = int_to_ptr.vmem [resolvable:$true] %s381
      %384 = dma.vmem_to_hbm [thread:$0]  %s382, 128, %s7, [#allocation4]
    $region49: #{tpu_custom_call.1} parent=1 // pred_fallthru
      _
    // Predicated region
    $region50: #{tpu_custom_call.1} parent=1 // pred_check
      _
    $region51: #{tpu_custom_call.1} parent=1 // pred_check_branch
      %386 = sbr.rel (0) target = $region53
    $region52: #{tpu_custom_call.1} parent=1 // pred_region
      %387 = dma.done [#allocation4], 128
    $region53: #{tpu_custom_call.1} parent=1 // pred_fallthru
      _
    %388 = vsyncpa [#allocation3], 1
    %389 = vsyncpa [#allocation6], 1
    %390 = vsyncpa [#allocation9], 1
    %391 = vsyncpa [#allocation4], 1

</llo_original>
